<compile_context>
chip_gen: v5e
topology: v5e:2x2
jax: 0.10.0
libtpu: 0.0.40
codegen_flags: <defaults>
</compile_context>

<pallas_src>
import functools
import math

import numpy as np
import jax
import jax.numpy as jnp
from jax.experimental import pallas as pl
from jax.experimental.pallas import tpu as pltpu


_ACTIVATIONS = {
    "relu": lambda h: jnp.maximum(h, 0.0),
    "silu": jax.nn.silu,
    "gelu": jax.nn.gelu,
    "tanh": jnp.tanh,
}


def _round_up(n: int, m: int) -> int:
    return ((n + m - 1) // m) * m


def _vmem_capacity_bytes() -> int:
    try:
        return int(pltpu.get_tpu_info().vmem_capacity_bytes)
    except Exception:
        return 64 * 1024 * 1024  # conservative fallback (v7x per-TC VMEM)


def _ffn_kernel(x_ref, *rest, num_layers, act_flags, act_name, act_dtype):
    """Fused Linear(+bias)/activation chain on one batch tile.

    rest = (w_0, ..., w_{L-1}, b_0, ..., b_{L-1}, o_ref)
    """
    act = _ACTIVATIONS[act_name]
    w_refs = rest[:num_layers]
    b_refs = rest[num_layers:2 * num_layers]
    o_ref = rest[2 * num_layers]

    compute_dtype = w_refs[0].dtype
    h = x_ref[...]                                           # (tile_m, d_in) compute dtype
    for layer in range(num_layers):
        z = jnp.dot(h, w_refs[layer][...],                   # MXU, f32 accumulation
                    preferred_element_type=jnp.float32)
        z = z.astype(act_dtype) + b_refs[layer][...]         # bias pre-cast to act_dtype
        if act_flags[layer]:
            z = act(z)                                       # VPU/EUP elementwise
        h = z.astype(compute_dtype) if layer + 1 < num_layers else z
    o_ref[...] = h.astype(o_ref.dtype)


def ffn_forward(x, weights, biases, act_flags, *, activation="relu",
                tile_m=None, compute_dtype=jnp.float32,
                act_dtype=jnp.float32, out_dtype=None):
    """x: (N, in_features); weights[l]: (h_in_l, h_out_l); biases[l]: (1, h_out_l)."""
    N, d_in = x.shape
    num_layers = len(weights)
    d_out = int(weights[-1].shape[1])
    out_dtype = x.dtype if out_dtype is None else out_dtype

    # One-time host-side casts of the (VMEM-resident) operands and the input.
    weights = [w.astype(compute_dtype) for w in weights]
    biases = [b.astype(act_dtype) for b in biases]
    if x.dtype != compute_dtype:
        x = x.astype(compute_dtype)

    in_itemsize = jnp.dtype(compute_dtype).itemsize
    out_itemsize = jnp.dtype(out_dtype).itemsize
    sub = {4: 8, 2: 16, 1: 32}.get(in_itemsize, 8)           # packed-sublane multiple

    # tile_m from the per-generation VMEM budget (v5e/v6e: 128 MiB, v7x: 64 MiB).
    # Per batch row we keep: 2x (double-buffered) input tile + 2x output tile + a few
    # live f32 intermediates at the widest layer width.
    vmem_cap = _vmem_capacity_bytes()
    vmem_budget = vmem_cap // 4
    max_width = max(int(w.shape[1]) for w in weights)
    per_row_bytes = (2 * d_in * in_itemsize + 2 * d_out * out_itemsize
                     + 3 * max_width * 4)
    tile_cap = max(sub, (vmem_budget // per_row_bytes) // sub * sub)
    if tile_m is None:
        tile_m = tile_cap
    tile_m = min(_round_up(int(tile_m), sub), tile_cap, 8192)
    # Keep >=4 grid steps when the batch allows it (megacore on v7x), but never shrink
    # tiles below 512 rows just to add steps, and never exceed the (rounded-up) batch.
    tile_m = min(tile_m, max(_round_up(pl.cdiv(N, 4), sub), 512))
    tile_m = max(sub, min(tile_m, _round_up(N, sub)))

    grid = (pl.cdiv(N, tile_m),)                             # partial last block is fine

    kernel = functools.partial(
        _ffn_kernel, num_layers=num_layers,
        act_flags=tuple(bool(f) for f in act_flags),
        act_name=activation, act_dtype=act_dtype)

    in_specs = [pl.BlockSpec((tile_m, d_in), lambda i: (i, 0))]
    for w in weights:   # whole weight VMEM-resident (constant block index across grid)
        in_specs.append(pl.BlockSpec(tuple(int(s) for s in w.shape), lambda i: (0, 0)))
    for b in biases:
        in_specs.append(pl.BlockSpec(tuple(int(s) for s in b.shape), lambda i: (0, 0)))
    out_specs = pl.BlockSpec((tile_m, d_out), lambda i: (i, 0))

    # Cost estimate from the true batch and unpadded dims.
    flops = 2 * N * sum(int(w.shape[0]) * int(w.shape[1]) for w in weights)
    transcendentals = 0
    if activation in ("silu", "gelu", "tanh"):
        transcendentals = sum(N * int(w.shape[1])
                              for w, f in zip(weights, act_flags) if f)
    bytes_accessed = (
        N * d_in * in_itemsize
        + sum(int(w.size) * in_itemsize for w in weights)
        + sum(int(b.size) * jnp.dtype(act_dtype).itemsize for b in biases)
        + N * d_out * out_itemsize)

    out = pl.pallas_call(
        kernel,
        out_shape=jax.ShapeDtypeStruct((N, d_out), out_dtype),
        grid_spec=pltpu.PrefetchScalarGridSpec(
            num_scalar_prefetch=0,
            grid=grid,
            in_specs=in_specs,
            out_specs=out_specs,
        ),
        compiler_params=pltpu.CompilerParams(
            dimension_semantics=("parallel",),               # batch tiles shard across TCs
            vmem_limit_bytes=int(vmem_cap // 2)),            # explicit, generation-aware
        cost_estimate=pl.CostEstimate(
            flops=flops, transcendentals=transcendentals,
            bytes_accessed=bytes_accessed),
    )(x, *weights, *biases)

    return out


def init_ffn_params(config, key, dtype=jnp.float32):
    """Flatten FFN(config)'s layer structure into (weights, biases, act_flags).

    act_flags[l] is True when an activation follows linear layer l (MLP-internal
    activation, or the FFN-level activation after each MLP block); the final linear
    never has a trailing activation — matching FFN.forward / MLP.forward.
    """
    dims = []
    act_flags = []
    for cfg in config[:-1]:                                  # self.layers (MLP blocks)
        dims.append((cfg["in_features"], cfg["hidden_features"])); act_flags.append(True)
        dims.append((cfg["hidden_features"], cfg["out_features"])); act_flags.append(True)
    last = config[-1]                                        # self.out_layer
    if last.get("hidden_features") is None:                  # plain nn.Linear
        dims.append((last["in_features"], last["out_features"])); act_flags.append(False)
    else:                                                    # MLP out layer
        dims.append((last["in_features"], last["hidden_features"])); act_flags.append(True)
        dims.append((last["hidden_features"], last["out_features"])); act_flags.append(False)

    keys = jax.random.split(key, 2 * len(dims))
    weights, biases = [], []
    for l, (fan_in, fan_out) in enumerate(dims):
        bound = 1.0 / math.sqrt(float(fan_in))               # torch nn.Linear init bounds
        w = jax.random.uniform(keys[2 * l], (fan_in, fan_out), dtype, -bound, bound)
        b = jax.random.uniform(keys[2 * l + 1], (1, fan_out), dtype, -bound, bound)
        weights.append(w)
        biases.append(b)
    return weights, biases, act_flags


def ffn_reference(x, weights, biases, act_flags, activation="relu"):
    act = _ACTIVATIONS[activation]
    h = x.astype(jnp.float32)
    for w, b, flag in zip(weights, biases, act_flags):
        h = h @ w.astype(jnp.float32) + b.astype(jnp.float32)
        if flag:
            h = act(h)
    return h


if __name__ == "__main__":
    # FFN(config, activation='relu', if_batch_normalized=False)
    config = [
        dict(in_features=32, hidden_features=64, out_features=64),
        dict(in_features=64, hidden_features=64, out_features=32),
        dict(in_features=32, out_features=16),   # no hidden -> plain Linear out_layer
    ]
    activation = "relu"

    key = jax.random.PRNGKey(0)
    pkey, xkey, xkey2 = jax.random.split(key, 3)
    weights, biases, act_flags = init_ffn_params(config, pkey, dtype=jnp.float32)

    # Small batch, deliberately not a multiple of 8: exercises the partial last block.
    batch = 20
    x = jax.random.normal(xkey, (batch, config[0]["in_features"]), dtype=jnp.float32)
    ref = ffn_reference(x, weights, biases, act_flags, activation)

    out = ffn_forward(x, weights, biases, act_flags, activation=activation)
    out = jax.block_until_ready(out)
    assert out.shape == (batch, config[-1]["out_features"])
    np.testing.assert_allclose(np.asarray(out), np.asarray(ref), rtol=1e-5, atol=1e-5)

    # Larger batch: multi-step grid with a partial last tile.
    batch2 = 600
    x2 = jax.random.normal(xkey2, (batch2, config[0]["in_features"]), dtype=jnp.float32)
    ref2 = ffn_reference(x2, weights, biases, act_flags, activation)
    out2 = ffn_forward(x2, weights, biases, act_flags, activation=activation)
    out2 = jax.block_until_ready(out2)
    assert out2.shape == (batch2, config[-1]["out_features"])
    np.testing.assert_allclose(np.asarray(out2), np.asarray(ref2), rtol=1e-5, atol=1e-5)

    # bf16 MXU-operand fast path (all generations; f32 accumulation, f32 activations).
    out_bf16 = ffn_forward(x2, weights, biases, act_flags, activation=activation,
                           compute_dtype=jnp.bfloat16)
    out_bf16 = jax.block_until_ready(out_bf16)
    rel = float(jnp.linalg.norm(out_bf16.astype(jnp.float32) - ref2)
                / (jnp.linalg.norm(ref2) + 1e-12))
    assert rel < 5e-2, f"bf16 relative error too large: {rel}"

    print("KERNEL_OK")
</pallas_src>

<mosaic_0001>
module attributes {stable_mosaic.version = 11 : i64} {
  func.func @_ffn_kernel(%arg0: i32, %arg1: memref<24x32xf32, #tpu.memory_space<vmem>>, %arg2: memref<32x64xf32, #tpu.memory_space<vmem>>, %arg3: memref<64x64xf32, #tpu.memory_space<vmem>>, %arg4: memref<64x64xf32, #tpu.memory_space<vmem>>, %arg5: memref<64x32xf32, #tpu.memory_space<vmem>>, %arg6: memref<32x16xf32, #tpu.memory_space<vmem>>, %arg7: memref<1x64xf32, #tpu.memory_space<vmem>>, %arg8: memref<1x64xf32, #tpu.memory_space<vmem>>, %arg9: memref<1x64xf32, #tpu.memory_space<vmem>>, %arg10: memref<1x32xf32, #tpu.memory_space<vmem>>, %arg11: memref<1x16xf32, #tpu.memory_space<vmem>>, %arg12: memref<24x16xf32, #tpu.memory_space<vmem>>) attributes {dimension_semantics = [#tpu.dimension_semantics<parallel>], iteration_bounds = array<i64: 1>, scalar_prefetch = 0 : i64, scratch_operands = 0 : i64, tpu.core_type = #tpu.core_type<tc>, window_params = [{transform_indices = @transform_0, window_bounds = array<i64: 24, 32>}, {pipeline_mode = #tpu.pipeline_mode<synchronous>, transform_indices = @transform_1, window_bounds = array<i64: 32, 64>}, {pipeline_mode = #tpu.pipeline_mode<synchronous>, transform_indices = @transform_2, window_bounds = array<i64: 64, 64>}, {pipeline_mode = #tpu.pipeline_mode<synchronous>, transform_indices = @transform_3, window_bounds = array<i64: 64, 64>}, {pipeline_mode = #tpu.pipeline_mode<synchronous>, transform_indices = @transform_4, window_bounds = array<i64: 64, 32>}, {pipeline_mode = #tpu.pipeline_mode<synchronous>, transform_indices = @transform_5, window_bounds = array<i64: 32, 16>}, {pipeline_mode = #tpu.pipeline_mode<synchronous>, transform_indices = @transform_6, window_bounds = array<i64: 1, 64>}, {pipeline_mode = #tpu.pipeline_mode<synchronous>, transform_indices = @transform_7, window_bounds = array<i64: 1, 64>}, {pipeline_mode = #tpu.pipeline_mode<synchronous>, transform_indices = @transform_8, window_bounds = array<i64: 1, 64>}, {pipeline_mode = #tpu.pipeline_mode<synchronous>, transform_indices = @transform_9, window_bounds = array<i64: 1, 32>}, {pipeline_mode = #tpu.pipeline_mode<synchronous>, transform_indices = @transform_10, window_bounds = array<i64: 1, 16>}, {transform_indices = @transform_11, window_bounds = array<i64: 24, 16>}]} {
    %c0 = arith.constant 0 : index
    %c0_0 = arith.constant 0 : index
    %0 = vector.load %arg1[%c0, %c0_0] : memref<24x32xf32, #tpu.memory_space<vmem>>, vector<24x32xf32>
    %c0_1 = arith.constant 0 : index
    %c0_2 = arith.constant 0 : index
    %1 = vector.load %arg2[%c0_1, %c0_2] : memref<32x64xf32, #tpu.memory_space<vmem>>, vector<32x64xf32>
    %cst = arith.constant dense<0.000000e+00> : vector<24x64xf32>
    %2 = tpu.matmul %0, %1, %cst {dimension_numbers = #tpu.dot_dimension_numbers<[1], [0], [0], [1], [0, 0, 1, 1], [], []>} : vector<24x32xf32>, vector<32x64xf32>, vector<24x64xf32> -> vector<24x64xf32>
    %c0_3 = arith.constant 0 : index
    %c0_4 = arith.constant 0 : index
    %3 = vector.load %arg7[%c0_3, %c0_4] : memref<1x64xf32, #tpu.memory_space<vmem>>, vector<1x64xf32>
    %4 = vector.broadcast %3 : vector<1x64xf32> to vector<24x64xf32>
    %5 = arith.addf %2, %4 : vector<24x64xf32>
    %cst_5 = arith.constant 0.000000e+00 : f32
    %6 = vector.broadcast %cst_5 : f32 to vector<24x64xf32>
    %7 = arith.maximumf %5, %6 : vector<24x64xf32>
    %c0_6 = arith.constant 0 : index
    %c0_7 = arith.constant 0 : index
    %8 = vector.load %arg3[%c0_6, %c0_7] : memref<64x64xf32, #tpu.memory_space<vmem>>, vector<64x64xf32>
    %cst_8 = arith.constant dense<0.000000e+00> : vector<24x64xf32>
    %9 = tpu.matmul %7, %8, %cst_8 {dimension_numbers = #tpu.dot_dimension_numbers<[1], [0], [0], [1], [0, 0, 1, 1], [], []>} : vector<24x64xf32>, vector<64x64xf32>, vector<24x64xf32> -> vector<24x64xf32>
    %c0_9 = arith.constant 0 : index
    %c0_10 = arith.constant 0 : index
    %10 = vector.load %arg8[%c0_9, %c0_10] : memref<1x64xf32, #tpu.memory_space<vmem>>, vector<1x64xf32>
    %11 = vector.broadcast %10 : vector<1x64xf32> to vector<24x64xf32>
    %12 = arith.addf %9, %11 : vector<24x64xf32>
    %cst_11 = arith.constant 0.000000e+00 : f32
    %13 = vector.broadcast %cst_11 : f32 to vector<24x64xf32>
    %14 = arith.maximumf %12, %13 : vector<24x64xf32>
    %c0_12 = arith.constant 0 : index
    %c0_13 = arith.constant 0 : index
    %15 = vector.load %arg4[%c0_12, %c0_13] : memref<64x64xf32, #tpu.memory_space<vmem>>, vector<64x64xf32>
    %cst_14 = arith.constant dense<0.000000e+00> : vector<24x64xf32>
    %16 = tpu.matmul %14, %15, %cst_14 {dimension_numbers = #tpu.dot_dimension_numbers<[1], [0], [0], [1], [0, 0, 1, 1], [], []>} : vector<24x64xf32>, vector<64x64xf32>, vector<24x64xf32> -> vector<24x64xf32>
    %c0_15 = arith.constant 0 : index
    %c0_16 = arith.constant 0 : index
    %17 = vector.load %arg9[%c0_15, %c0_16] : memref<1x64xf32, #tpu.memory_space<vmem>>, vector<1x64xf32>
    %18 = vector.broadcast %17 : vector<1x64xf32> to vector<24x64xf32>
    %19 = arith.addf %16, %18 : vector<24x64xf32>
    %cst_17 = arith.constant 0.000000e+00 : f32
    %20 = vector.broadcast %cst_17 : f32 to vector<24x64xf32>
    %21 = arith.maximumf %19, %20 : vector<24x64xf32>
    %c0_18 = arith.constant 0 : index
    %c0_19 = arith.constant 0 : index
    %22 = vector.load %arg5[%c0_18, %c0_19] : memref<64x32xf32, #tpu.memory_space<vmem>>, vector<64x32xf32>
    %cst_20 = arith.constant dense<0.000000e+00> : vector<24x32xf32>
    %23 = tpu.matmul %21, %22, %cst_20 {dimension_numbers = #tpu.dot_dimension_numbers<[1], [0], [0], [1], [0, 0, 1, 1], [], []>} : vector<24x64xf32>, vector<64x32xf32>, vector<24x32xf32> -> vector<24x32xf32>
    %c0_21 = arith.constant 0 : index
    %c0_22 = arith.constant 0 : index
    %24 = vector.load %arg10[%c0_21, %c0_22] : memref<1x32xf32, #tpu.memory_space<vmem>>, vector<1x32xf32>
    %25 = vector.broadcast %24 : vector<1x32xf32> to vector<24x32xf32>
    %26 = arith.addf %23, %25 : vector<24x32xf32>
    %cst_23 = arith.constant 0.000000e+00 : f32
    %27 = vector.broadcast %cst_23 : f32 to vector<24x32xf32>
    %28 = arith.maximumf %26, %27 : vector<24x32xf32>
    %c0_24 = arith.constant 0 : index
    %c0_25 = arith.constant 0 : index
    %29 = vector.load %arg6[%c0_24, %c0_25] : memref<32x16xf32, #tpu.memory_space<vmem>>, vector<32x16xf32>
    %cst_26 = arith.constant dense<0.000000e+00> : vector<24x16xf32>
    %30 = tpu.matmul %28, %29, %cst_26 {dimension_numbers = #tpu.dot_dimension_numbers<[1], [0], [0], [1], [0, 0, 1, 1], [], []>} : vector<24x32xf32>, vector<32x16xf32>, vector<24x16xf32> -> vector<24x16xf32>
    %c0_27 = arith.constant 0 : index
    %c0_28 = arith.constant 0 : index
    %31 = vector.load %arg11[%c0_27, %c0_28] : memref<1x16xf32, #tpu.memory_space<vmem>>, vector<1x16xf32>
    %32 = vector.broadcast %31 : vector<1x16xf32> to vector<24x16xf32>
    %33 = arith.addf %30, %32 : vector<24x16xf32>
    %c0_29 = arith.constant 0 : index
    %c0_30 = arith.constant 0 : index
    %34 = vector.load %arg12[%c0_29, %c0_30] : memref<24x16xf32, #tpu.memory_space<vmem>>, vector<24x16xf32>
    tpu.vector_store %arg12[%c0_29, %c0_30], %33 {strides = array<i32>} : memref<24x16xf32, #tpu.memory_space<vmem>>, vector<24x16xf32>,
    return
  }
  func.func @transform_0(%arg0: i32) -> (i32, i32) {
    %c0_i32 = arith.constant 0 : i32
    %c0_i32_0 = arith.constant 0 : i32
    return %arg0, %c0_i32 : i32, i32
  }
  func.func @transform_1(%arg0: i32) -> (i32, i32) {
    %c0_i32 = arith.constant 0 : i32
    %c0_i32_0 = arith.constant 0 : i32
    %c0_i32_1 = arith.constant 0 : i32
    return %c0_i32, %c0_i32_0 : i32, i32
  }
  func.func @transform_2(%arg0: i32) -> (i32, i32) {
    %c0_i32 = arith.constant 0 : i32
    %c0_i32_0 = arith.constant 0 : i32
    %c0_i32_1 = arith.constant 0 : i32
    return %c0_i32, %c0_i32_0 : i32, i32
  }
  func.func @transform_3(%arg0: i32) -> (i32, i32) {
    %c0_i32 = arith.constant 0 : i32
    %c0_i32_0 = arith.constant 0 : i32
    %c0_i32_1 = arith.constant 0 : i32
    return %c0_i32, %c0_i32_0 : i32, i32
  }
  func.func @transform_4(%arg0: i32) -> (i32, i32) {
    %c0_i32 = arith.constant 0 : i32
    %c0_i32_0 = arith.constant 0 : i32
    %c0_i32_1 = arith.constant 0 : i32
    return %c0_i32, %c0_i32_0 : i32, i32
  }
  func.func @transform_5(%arg0: i32) -> (i32, i32) {
    %c0_i32 = arith.constant 0 : i32
    %c0_i32_0 = arith.constant 0 : i32
    %c0_i32_1 = arith.constant 0 : i32
    return %c0_i32, %c0_i32_0 : i32, i32
  }
  func.func @transform_6(%arg0: i32) -> (i32, i32) {
    %c0_i32 = arith.constant 0 : i32
    %c0_i32_0 = arith.constant 0 : i32
    %c0_i32_1 = arith.constant 0 : i32
    return %c0_i32, %c0_i32_0 : i32, i32
  }
  func.func @transform_7(%arg0: i32) -> (i32, i32) {
    %c0_i32 = arith.constant 0 : i32
    %c0_i32_0 = arith.constant 0 : i32
    %c0_i32_1 = arith.constant 0 : i32
    return %c0_i32, %c0_i32_0 : i32, i32
  }
  func.func @transform_8(%arg0: i32) -> (i32, i32) {
    %c0_i32 = arith.constant 0 : i32
    %c0_i32_0 = arith.constant 0 : i32
    %c0_i32_1 = arith.constant 0 : i32
    return %c0_i32, %c0_i32_0 : i32, i32
  }
  func.func @transform_9(%arg0: i32) -> (i32, i32) {
    %c0_i32 = arith.constant 0 : i32
    %c0_i32_0 = arith.constant 0 : i32
    %c0_i32_1 = arith.constant 0 : i32
    return %c0_i32, %c0_i32_0 : i32, i32
  }
  func.func @transform_10(%arg0: i32) -> (i32, i32) {
    %c0_i32 = arith.constant 0 : i32
    %c0_i32_0 = arith.constant 0 : i32
    %c0_i32_1 = arith.constant 0 : i32
    return %c0_i32, %c0_i32_0 : i32, i32
  }
  func.func @transform_11(%arg0: i32) -> (i32, i32) {
    %c0_i32 = arith.constant 0 : i32
    %c0_i32_0 = arith.constant 0 : i32
    return %arg0, %c0_i32 : i32, i32
  }
}

</mosaic_0001>

<llo_original>
// kernel: tpu_custom_call.1
$region0: #{tpu_custom_call.1}
  #allocation0 [shape = 'u32[]', space=smem, size = 0x4, offset = 0x4, fixed_abs, tag = 'smem constant byte address 0x4 - core index']
  #allocation1 [shape = 'u32[72,128]{1,0:T(1,128)}', space=vmem, size = 0x9000, scoped, tag = 'internal scratch']
  %s0 = inlined_call_operand.hbm [shape: f32[20,32], index: 0, kind: input, shape index: {}]
  %s1 = inlined_call_operand.hbm [shape: f32[32,64], index: 1, kind: input, shape index: {}]
  %s2 = inlined_call_operand.vmem [shape: f32[64,64], index: 2, kind: input, shape index: {}]
  %s3 = inlined_call_operand.vmem [shape: f32[64,64], index: 3, kind: input, shape index: {}]
  %s4 = inlined_call_operand.vmem [shape: f32[64,32], index: 4, kind: input, shape index: {}]
  %s5 = inlined_call_operand.vmem [shape: f32[32,16], index: 5, kind: input, shape index: {}]
  %s6 = inlined_call_operand.vmem [shape: f32[1,64], index: 6, kind: input, shape index: {}]
  %s7 = inlined_call_operand.vmem [shape: f32[1,64], index: 7, kind: input, shape index: {}]
  %s8 = inlined_call_operand.vmem [shape: f32[1,64], index: 8, kind: input, shape index: {}]
  %s9 = inlined_call_operand.vmem [shape: f32[1,32], index: 9, kind: input, shape index: {}]
  %s10 = inlined_call_operand.vmem [shape: f32[1,16], index: 10, kind: input, shape index: {}]
  %s11 = inlined_call_operand.vmem [shape: f32[20,16], index: 11, kind: output, shape index: {}]
  %s12 = sld [smem:[#allocation0]]
  $region62: #{tpu_custom_call.1} parent=0
    _
  %s14 = ssub.s32 1, %s12
  %s15 = scalar_select 0, %s14, %s12
  $region1: #{tpu_custom_call.1} parent=0
    #allocation2 [shape = 'u8[12288]{0}', space=vmem, size = 0x3000, scoped, tag = 'input window, operand 0, single buffered']
    #allocation3 [shape = 's32[1]{0}', space=sflag, size = 0x4, scoped, tag = 'scoped memory for tpu_custom_call.1']
    #allocation4 [shape = 'u8[16384]{0}', space=vmem, size = 0x4000, scoped, tag = 'input window, operand 1, single buffered']
    #allocation5 [shape = 's32[1]{0}', space=sflag, size = 0x4, scoped, tag = 'scoped memory for tpu_custom_call.1']
    %16 = vsyncpa [#allocation3], 0
    %17 = vsyncpa [#allocation5], 0
    // Predicated region
    $region2: #{tpu_custom_call.1} parent=1 // pred_check
      _
    $region3: #{tpu_custom_call.1} parent=1 // pred_check_branch
      %19 = sbr.rel (0) target = $region5
    $region4: #{tpu_custom_call.1} parent=1 // pred_region
      %21 = vsyncadd [#allocation3], 0
      %s22 = sshll.u32 %s0, 4
      %s23 = int_to_ptr.hbm [resolvable:$true] %s22
      %s24 = sshll.u32 [#allocation2], 4
      %s25 = int_to_ptr.vmem [resolvable:$true] %s24
      %30 = dma.hbm_to_vmem [thread:$0]  %s23, 384, %s25, [#allocation3], 128, 128, 8
    $region5: #{tpu_custom_call.1} parent=1 // pred_fallthru
      _
    // Predicated region
    $region6: #{tpu_custom_call.1} parent=1 // pred_check
      _
    $region7: #{tpu_custom_call.1} parent=1 // pred_check_branch
      %32 = sbr.rel (0) target = $region9
    $region8: #{tpu_custom_call.1} parent=1 // pred_region
      %34 = vsyncadd [#allocation5], 0
      %s35 = sshll.u32 %s1, 4
      %s36 = int_to_ptr.hbm [resolvable:$true] %s35
      %s37 = sshll.u32 [#allocation4], 4
      %s38 = int_to_ptr.vmem [resolvable:$true] %s37
      %43 = dma.hbm_to_vmem [thread:$0]  %s36, 512, %s38, [#allocation5], 128, 128, 8
    $region9: #{tpu_custom_call.1} parent=1 // pred_fallthru
      _
    // Predicated region
    $region10: #{tpu_custom_call.1} parent=1 // pred_check
      _
    $region11: #{tpu_custom_call.1} parent=1 // pred_check_branch
      %45 = sbr.rel (0) target = $region13
    $region12: #{tpu_custom_call.1} parent=1 // pred_region
      _
    $region13: #{tpu_custom_call.1} parent=1 // pred_fallthru
      _
    // Predicated region
    $region14: #{tpu_custom_call.1} parent=1 // pred_check
      _
    $region15: #{tpu_custom_call.1} parent=1 // pred_check_branch
      %47 = sbr.rel (0) target = $region17
    $region16: #{tpu_custom_call.1} parent=1 // pred_region
      _
    $region17: #{tpu_custom_call.1} parent=1 // pred_fallthru
      _
    // Predicated region
    $region18: #{tpu_custom_call.1} parent=1 // pred_check
      _
    $region19: #{tpu_custom_call.1} parent=1 // pred_check_branch
      %49 = sbr.rel (0) target = $region21
    $region20: #{tpu_custom_call.1} parent=1 // pred_region
      _
    $region21: #{tpu_custom_call.1} parent=1 // pred_fallthru
      _
    // Predicated region
    $region22: #{tpu_custom_call.1} parent=1 // pred_check
      _
    $region23: #{tpu_custom_call.1} parent=1 // pred_check_branch
      %51 = sbr.rel (0) target = $region25
    $region24: #{tpu_custom_call.1} parent=1 // pred_region
      _
    $region25: #{tpu_custom_call.1} parent=1 // pred_fallthru
      _
    // Predicated region
    $region26: #{tpu_custom_call.1} parent=1 // pred_check
      _
    $region27: #{tpu_custom_call.1} parent=1 // pred_check_branch
      %53 = sbr.rel (0) target = $region29
    $region28: #{tpu_custom_call.1} parent=1 // pred_region
      _
    $region29: #{tpu_custom_call.1} parent=1 // pred_fallthru
      _
    // Predicated region
    $region30: #{tpu_custom_call.1} parent=1 // pred_check
      _
    $region31: #{tpu_custom_call.1} parent=1 // pred_check_branch
      %55 = sbr.rel (0) target = $region33
    $region32: #{tpu_custom_call.1} parent=1 // pred_region
      _
    $region33: #{tpu_custom_call.1} parent=1 // pred_fallthru
      _
    // Predicated region
    $region34: #{tpu_custom_call.1} parent=1 // pred_check
      _
    $region35: #{tpu_custom_call.1} parent=1 // pred_check_branch
      %57 = sbr.rel (0) target = $region37
    $region36: #{tpu_custom_call.1} parent=1 // pred_region
      _
    $region37: #{tpu_custom_call.1} parent=1 // pred_fallthru
      _
    // Predicated region
    $region38: #{tpu_custom_call.1} parent=1 // pred_check
      _
    $region39: #{tpu_custom_call.1} parent=1 // pred_check_branch
      %59 = sbr.rel (0) target = $region41
    $region40: #{tpu_custom_call.1} parent=1 // pred_region
      _
    $region41: #{tpu_custom_call.1} parent=1 // pred_fallthru
      _
    // Predicated region
    $region42: #{tpu_custom_call.1} parent=1 // pred_check
      _
    $region43: #{tpu_custom_call.1} parent=1 // pred_check_branch
      %61 = sbr.rel (0) target = $region45
    $region44: #{tpu_custom_call.1} parent=1 // pred_region
      _
    $region45: #{tpu_custom_call.1} parent=1 // pred_fallthru
      _
    // Predicated region
    $region46: #{tpu_custom_call.1} parent=1 // pred_check
      _
    $region47: #{tpu_custom_call.1} parent=1 // pred_check_branch
      %63 = sbr.rel (0) target = $region49
    $region48: #{tpu_custom_call.1} parent=1 // pred_region
      %65 = dma.done [#allocation3], 384
    $region49: #{tpu_custom_call.1} parent=1 // pred_fallthru
      _
    // Predicated region
    $region50: #{tpu_custom_call.1} parent=1 // pred_check
      _
    $region51: #{tpu_custom_call.1} parent=1 // pred_check_branch
      %67 = sbr.rel (0) target = $region53
    $region52: #{tpu_custom_call.1} parent=1 // pred_region
      %69 = dma.done [#allocation5], 512
    $region53: #{tpu_custom_call.1} parent=1 // pred_fallthru
      _
    %v70 = vld [vmem:[#allocation2] sm:$0xff]
    %v71 = vld [vmem:[#allocation2 + $0x8] sm:$0xff]
    %v72 = vld [vmem:[#allocation2 + $0x10] sm:$0xff]
    %v73 = vld [vmem:[#allocation4] sm:$0xff]
    %v74 = vld [vmem:[#allocation4 + $0x8] sm:$0xff]
    %v75 = vld [vmem:[#allocation4 + $0x10] sm:$0xff]
    %v76 = vld [vmem:[#allocation4 + $0x18] sm:$0xff]
    %v77 = vld [vmem:[%s6] sm:$0x1]
    %v79 = vperm.slane %v77, 0
    %vm81 = vcmask 261120
    %v83 = vsel %vm81, %v70, 0
    %v86 = vsel %vm81, %v71, 0
    %v89 = vsel %vm81, %v72, 0
    %91 = vmatpush.msra.mxu0 0.0
    %92 = vmatpush.msra.mxu0 0.0
    %93 = vmatpush.msra.mxu0 0.0
    %94 = vmatpush.msra.mxu0 0.0
    %95 = vmatpush.msra.mxu0 0.0
    %96 = vmatpush.msra.mxu0 0.0
    %97 = vmatpush.msra.mxu0 0.0
    %98 = vmatpush.msra.mxu0 0.0
    %99 = vmatpush.msra.mxu0 0.0
    %100 = vmatpush.msra.mxu0 0.0
    %101 = vmatpush.msra.mxu0 0.0
    %102 = vmatpush.msra.mxu0 0.0
    %103 = vmatpush.msra.mxu0 %v76
    %104 = vmatpush.msra.mxu0 %v75
    %105 = vmatpush.msra.mxu0 %v74
    %106 = vmatpush.msra.mxu0 %v73
    %107 = vmatmul.f32.gmra.mxu0 %v83
    %v108 = vpop.f32.mrf.mxu0
    %v109 = vadd.f32 %v79, %v108
    %110 = vmatmul.f32.gmra.mxu0 %v86
    %v111 = vpop.f32.mrf.mxu0
    %v112 = vadd.f32 %v79, %v111
    %113 = vmatmul.f32.gmra.mxu0 %v89
    %v114 = vpop.f32.mrf.mxu0
    %v115 = vadd.f32 %v79, %v114
    %116 = vdwg.mxu0
    %v117 = vmax.f32 %v109, 0.0
    %v118 = vmax.f32 %v112, 0.0
    %v119 = vmax.f32 %v115, 0.0
    %v120 = vld [vmem:[%s2] sm:$0xff]
    %v121 = vld [vmem:[%s2 + $0x8] sm:$0xff]
    %v122 = vld [vmem:[%s2 + $0x10] sm:$0xff]
    %v123 = vld [vmem:[%s2 + $0x18] sm:$0xff]
    %v124 = vld [vmem:[%s2 + $0x20] sm:$0xff]
    %v125 = vld [vmem:[%s2 + $0x28] sm:$0xff]
    %v126 = vld [vmem:[%s2 + $0x30] sm:$0xff]
    %v127 = vld [vmem:[%s2 + $0x38] sm:$0xff]
    %v128 = vld [vmem:[%s7] sm:$0x1]
    %v130 = vperm.slane %v128, 0
    %vm132 = vcmask 523264
    %v134 = vsel %vm132, %v117, 0
    %v137 = vsel %vm132, %v118, 0
    %v140 = vsel %vm132, %v119, 0
    %142 = vmatpush.msra.mxu0 0.0
    %143 = vmatpush.msra.mxu0 0.0
    %144 = vmatpush.msra.mxu0 0.0
    %145 = vmatpush.msra.mxu0 0.0
    %146 = vmatpush.msra.mxu0 0.0
    %147 = vmatpush.msra.mxu0 0.0
    %148 = vmatpush.msra.mxu0 0.0
    %149 = vmatpush.msra.mxu0 0.0
    %150 = vmatpush.msra.mxu0 %v127
    %151 = vmatpush.msra.mxu0 %v126
    %152 = vmatpush.msra.mxu0 %v125
    %153 = vmatpush.msra.mxu0 %v124
    %154 = vmatpush.msra.mxu0 %v123
    %155 = vmatpush.msra.mxu0 %v122
    %156 = vmatpush.msra.mxu0 %v121
    %157 = vmatpush.msra.mxu0 %v120
    %158 = vmatmul.f32.gmra.mxu0 %v134
    %v159 = vpop.f32.mrf.mxu0
    %v160 = vadd.f32 %v130, %v159
    %161 = vmatmul.f32.gmra.mxu0 %v137
    %v162 = vpop.f32.mrf.mxu0
    %v163 = vadd.f32 %v130, %v162
    %164 = vmatmul.f32.gmra.mxu0 %v140
    %v165 = vpop.f32.mrf.mxu0
    %v166 = vadd.f32 %v130, %v165
    %167 = vdwg.mxu0
    %v168 = vmax.f32 %v160, 0.0
    %v169 = vmax.f32 %v163, 0.0
    %v170 = vmax.f32 %v166, 0.0
    %v171 = vld [vmem:[%s3] sm:$0xff]
    %v172 = vld [vmem:[%s3 + $0x8] sm:$0xff]
    %v173 = vld [vmem:[%s3 + $0x10] sm:$0xff]
    %v174 = vld [vmem:[%s3 + $0x18] sm:$0xff]
    %v175 = vld [vmem:[%s3 + $0x20] sm:$0xff]
    %v176 = vld [vmem:[%s3 + $0x28] sm:$0xff]
    %v177 = vld [vmem:[%s3 + $0x30] sm:$0xff]
    %v178 = vld [vmem:[%s3 + $0x38] sm:$0xff]
    %v179 = vld [vmem:[%s8] sm:$0x1]
    %v181 = vperm.slane %v179, 0
    %v184 = vsel %vm132, %v168, 0
    %v187 = vsel %vm132, %v169, 0
    %v190 = vsel %vm132, %v170, 0
    %192 = vmatpush.msra.mxu0 0.0
    %193 = vmatpush.msra.mxu0 0.0
    %194 = vmatpush.msra.mxu0 0.0
    %195 = vmatpush.msra.mxu0 0.0
    %196 = vmatpush.msra.mxu0 0.0
    %197 = vmatpush.msra.mxu0 0.0
    %198 = vmatpush.msra.mxu0 0.0
    %199 = vmatpush.msra.mxu0 0.0
    %200 = vmatpush.msra.mxu0 %v178
    %201 = vmatpush.msra.mxu0 %v177
    %202 = vmatpush.msra.mxu0 %v176
    %203 = vmatpush.msra.mxu0 %v175
    %204 = vmatpush.msra.mxu0 %v174
    %205 = vmatpush.msra.mxu0 %v173
    %206 = vmatpush.msra.mxu0 %v172
    %207 = vmatpush.msra.mxu0 %v171
    %208 = vmatmul.f32.gmra.mxu0 %v184
    %v209 = vpop.f32.mrf.mxu0
    %v210 = vadd.f32 %v181, %v209
    %211 = vmatmul.f32.gmra.mxu0 %v187
    %v212 = vpop.f32.mrf.mxu0
    %v213 = vadd.f32 %v181, %v212
    %214 = vmatmul.f32.gmra.mxu0 %v190
    %v215 = vpop.f32.mrf.mxu0
    %v216 = vadd.f32 %v181, %v215
    %217 = vdwg.mxu0
    %v218 = vmax.f32 %v210, 0.0
    %v219 = vmax.f32 %v213, 0.0
    %v220 = vmax.f32 %v216, 0.0
    %v221 = vld [vmem:[%s4] sm:$0xff]
    %v222 = vld [vmem:[%s4 + $0x8] sm:$0xff]
    %v223 = vld [vmem:[%s4 + $0x10] sm:$0xff]
    %v224 = vld [vmem:[%s4 + $0x18] sm:$0xff]
    %v225 = vld [vmem:[%s4 + $0x20] sm:$0xff]
    %v226 = vld [vmem:[%s4 + $0x28] sm:$0xff]
    %v227 = vld [vmem:[%s4 + $0x30] sm:$0xff]
    %v228 = vld [vmem:[%s4 + $0x38] sm:$0xff]
    %v229 = vld [vmem:[%s9] sm:$0x1]
    %v231 = vperm.slane %v229, 0
    %v234 = vsel %vm132, %v218, 0
    %v237 = vsel %vm132, %v219, 0
    %v240 = vsel %vm132, %v220, 0
    %242 = vmatpush.msra.mxu0 0.0
    %243 = vmatpush.msra.mxu0 0.0
    %244 = vmatpush.msra.mxu0 0.0
    %245 = vmatpush.msra.mxu0 0.0
    %246 = vmatpush.msra.mxu0 0.0
    %247 = vmatpush.msra.mxu0 0.0
    %248 = vmatpush.msra.mxu0 0.0
    %249 = vmatpush.msra.mxu0 0.0
    %250 = vmatpush.msra.mxu0 %v228
    %251 = vmatpush.msra.mxu0 %v227
    %252 = vmatpush.msra.mxu0 %v226
    %253 = vmatpush.msra.mxu0 %v225
    %254 = vmatpush.msra.mxu0 %v224
    %255 = vmatpush.msra.mxu0 %v223
    %256 = vmatpush.msra.mxu0 %v222
    %257 = vmatpush.msra.mxu0 %v221
    %258 = vmatmul.f32.gmra.mxu0 %v234
    %v259 = vpop.f32.mrf.mxu0
    %v260 = vadd.f32 %v231, %v259
    %261 = vmatmul.f32.gmra.mxu0 %v237
    %v262 = vpop.f32.mrf.mxu0
    %v263 = vadd.f32 %v231, %v262
    %264 = vmatmul.f32.gmra.mxu0 %v240
    %v265 = vpop.f32.mrf.mxu0
    %v266 = vadd.f32 %v231, %v265
    %267 = vdwg.mxu0
    %v268 = vmax.f32 %v260, 0.0
    %v269 = vmax.f32 %v263, 0.0
    %v270 = vmax.f32 %v266, 0.0
    %v271 = vld [vmem:[%s5] sm:$0xff]
    %v272 = vld [vmem:[%s5 + $0x8] sm:$0xff]
    %v273 = vld [vmem:[%s5 + $0x10] sm:$0xff]
    %v274 = vld [vmem:[%s5 + $0x18] sm:$0xff]
    %v275 = vld [vmem:[%s10] sm:$0x1]
    %v277 = vperm.slane %v275, 0
    %v280 = vsel %vm81, %v268, 0
    %v283 = vsel %vm81, %v269, 0
    %v286 = vsel %vm81, %v270, 0
    %288 = vmatpush.msra.mxu0 0.0
    %289 = vmatpush.msra.mxu0 0.0
    %290 = vmatpush.msra.mxu0 0.0
    %291 = vmatpush.msra.mxu0 0.0
    %292 = vmatpush.msra.mxu0 0.0
    %293 = vmatpush.msra.mxu0 0.0
    %294 = vmatpush.msra.mxu0 0.0
    %295 = vmatpush.msra.mxu0 0.0
    %296 = vmatpush.msra.mxu0 0.0
    %297 = vmatpush.msra.mxu0 0.0
    %298 = vmatpush.msra.mxu0 0.0
    %299 = vmatpush.msra.mxu0 0.0
    %300 = vmatpush.msra.mxu0 %v274
    %301 = vmatpush.msra.mxu0 %v273
    %302 = vmatpush.msra.mxu0 %v272
    %303 = vmatpush.msra.mxu0 %v271
    %304 = vmatmul.f32.gmra.mxu0 %v280
    %v305 = vpop.f32.mrf.mxu0
    %v306 = vadd.f32 %v277, %v305
    %307 = vmatmul.f32.gmra.mxu0 %v283
    %v308 = vpop.f32.mrf.mxu0
    %v309 = vadd.f32 %v277, %v308
    %310 = vmatmul.f32.gmra.mxu0 %v286
    %v311 = vpop.f32.mrf.mxu0
    %v312 = vadd.f32 %v277, %v311
    %313 = vdwg.mxu0
    %vm314 = vcmask 130048
    %315 = vst.msk [vmem:[%s11] sm:$0xff] %vm314, %v306
    %316 = vst.msk [vmem:[%s11 + $0x8] sm:$0xff] %vm314, %v309
    %317 = vst.msk [vmem:[%s11 + $0x10] sm:$0xff] %vm314, %v312
    // Predicated region
    $region54: #{tpu_custom_call.1} parent=1 // pred_check
      _
    $region55: #{tpu_custom_call.1} parent=1 // pred_check_branch
      %319 = sbr.rel (0) target = $region57
    $region56: #{tpu_custom_call.1} parent=1 // pred_region
      _
    $region57: #{tpu_custom_call.1} parent=1 // pred_fallthru
      _
    // Predicated region
    $region58: #{tpu_custom_call.1} parent=1 // pred_check
      _
    $region59: #{tpu_custom_call.1} parent=1 // pred_check_branch
      %321 = sbr.rel (0) target = $region61
    $region60: #{tpu_custom_call.1} parent=1 // pred_region
      _
    $region61: #{tpu_custom_call.1} parent=1 // pred_fallthru
      _
    %322 = vsyncpa [#allocation3], 1
    %323 = vsyncpa [#allocation5], 1

</llo_original>
